<compile_context>
chip_gen: v7x
topology: tpu7x:2x2x1
jax: 0.10.0
libtpu: 0.0.40
codegen_flags: <defaults>
</compile_context>

<pallas_src>
import functools

import jax
import jax.numpy as jnp
from jax import lax
from jax.experimental import pallas as pl
from jax.experimental.pallas import tpu as pltpu

_LANE = 128


def _round_up(x, m):
    return ((x + m - 1) // m) * m


def prepare_head_params(wq_t, wk_t, wv_t, n_embd):
    """One-time parameter setup.

    wq_t/wk_t/wv_t: (C, H) transposed nn.Linear weights (so q = x @ wq_t).
    Returns a fused bf16 weight of shape (C, 3*Hp) with:
      * the C**-0.5 attention scale folded into the q part,
      * each part zero-padded to Hp = round_up(H, 128) so the in-kernel q/k/v
        slices are 128-lane aligned (tile-aligned, free).
    """
    C, H = wq_t.shape
    Hp = _round_up(H, _LANE)
    scale = jnp.float32(n_embd) ** jnp.float32(-0.5)

    def pad(w):
        return jnp.pad(w.astype(jnp.float32), ((0, 0), (0, Hp - H)))

    wqkv = jnp.concatenate([pad(wq_t * scale), pad(wk_t), pad(wv_t)], axis=1)
    return wqkv.astype(jnp.bfloat16)  # (C, 3*Hp)


def _head_kernel(x_ref, wqkv_ref, o_ref, *, head_size_padded):
    """One grid step = one block of Bblk batch elements.

    x_ref    : (Bblk, T, C)      VMEM, f32
    wqkv_ref : (C, 3*Hp)         VMEM, bf16 (shared across grid steps)
    o_ref    : (Bblk, T, Hp)     VMEM, f32 (lane-dense, padded head dim)
    """
    Hp = head_size_padded
    Bblk, T, C = x_ref.shape

    # Fold batch into M: one projection matmul with M = Bblk*T, bf16 operands.
    x2d = x_ref[...].reshape(Bblk * T, C).astype(jnp.bfloat16)
    qkv = jnp.dot(x2d, wqkv_ref[...],
                  preferred_element_type=jnp.float32)          # (Bblk*T, 3Hp) f32
    qkv = qkv.reshape(Bblk, T, 3 * Hp)

    # 128-aligned lane slices (scale already folded into the q weight).
    q = qkv[:, :, :Hp]
    k = qkv[:, :, Hp:2 * Hp]
    v = qkv[:, :, 2 * Hp:]

    # Scores: contract the (padded) head axis, batch over Bblk. Padding
    # columns are zero so they contribute nothing.
    wei = lax.dot_general(
        q.astype(jnp.bfloat16), k.astype(jnp.bfloat16),
        (((2,), (2,)), ((0,), (0,))),
        preferred_element_type=jnp.float32)                    # (Bblk, T, T) f32

    # Causal mask with a finite large-negative value (NaN-safe), f32 softmax.
    row = lax.broadcasted_iota(jnp.int32, (T, T), 0)
    col = lax.broadcasted_iota(jnp.int32, (T, T), 1)
    wei = jnp.where((col <= row)[None, :, :], wei, jnp.float32(-1e30))

    m = jnp.max(wei, axis=-1, keepdims=True)
    p = jnp.exp(wei - m)
    denom = jnp.sum(p, axis=-1, keepdims=True)
    attn = p / denom                                           # exact reciprocal

    out = lax.dot_general(
        attn.astype(jnp.bfloat16), v.astype(jnp.bfloat16),
        (((2,), (1,)), ((0,), (0,))),
        preferred_element_type=jnp.float32)                    # (Bblk, T, Hp)
    o_ref[...] = out.astype(o_ref.dtype)


def _pick_batch_block(B, batch_block):
    bblk = max(1, min(batch_block, B))
    if B >= 2:
        # >= 2 grid steps so the "parallel" axis can be split across v7x's 2 TCs.
        bblk = min(bblk, max(1, B // 2))
    while B % bblk != 0:  # avoid padded-tail grid steps (wasted compute)
        bblk -= 1
    return bblk


def head_forward(x, wqkv, head_size, *, batch_block=8):
    """x: (B, T, C) float32; wqkv: (C, 3*Hp) bf16 from prepare_head_params."""
    B, T, C = x.shape
    Hp = wqkv.shape[1] // 3
    bblk = _pick_batch_block(B, batch_block)
    grid = (pl.cdiv(B, bblk),)

    kernel = functools.partial(_head_kernel, head_size_padded=Hp)
    out_padded = pl.pallas_call(
        kernel,
        out_shape=jax.ShapeDtypeStruct((B, T, Hp), x.dtype),
        grid_spec=pltpu.PrefetchScalarGridSpec(
            num_scalar_prefetch=0,
            grid=grid,
            in_specs=[
                pl.BlockSpec((bblk, T, C), lambda b: (b, 0, 0)),
                pl.BlockSpec((C, 3 * Hp), lambda b: (0, 0)),
            ],
            out_specs=pl.BlockSpec((bblk, T, Hp), lambda b: (b, 0, 0)),
        ),
        compiler_params=pltpu.CompilerParams(
            dimension_semantics=("parallel",)),
    )(x, wqkv)
    return out_padded[:, :, :head_size]


def head_reference(x, wq_t, wk_t, wv_t):
    """Pure-JAX f32 reference matching the PyTorch forward exactly."""
    B, T, C = x.shape
    q = x @ wq_t
    k = x @ wk_t
    v = x @ wv_t
    wei = (q @ jnp.swapaxes(k, -2, -1)) * (C ** -0.5)
    tril = jnp.tril(jnp.ones((T, T), dtype=bool))
    wei = jnp.where(tril, wei, -jnp.inf)
    wei = jax.nn.softmax(wei, axis=-1)
    return wei @ v


if __name__ == "__main__":
    # Small shapes consistent with the module.
    block_size = 8   # max sequence length (tril size)
    n_embd = 32
    head_size = 16
    B, T = 2, block_size

    key = jax.random.PRNGKey(0)
    kx, kq, kk, kv = jax.random.split(key, 4)

    x = jax.random.normal(kx, (B, T, n_embd), dtype=jnp.float32)
    # nn.Linear(n_embd, head_size, bias=False) weight is (head_size, n_embd);
    # we store the transpose (n_embd, head_size) so q = x @ wq_t.
    wq_t = (jax.random.normal(kq, (n_embd, head_size), dtype=jnp.float32)
            * (1.0 / jnp.sqrt(n_embd)))
    wk_t = (jax.random.normal(kk, (n_embd, head_size), dtype=jnp.float32)
            * (1.0 / jnp.sqrt(n_embd)))
    wv_t = (jax.random.normal(kv, (n_embd, head_size), dtype=jnp.float32)
            * (1.0 / jnp.sqrt(n_embd)))

    # One-time parameter prep (scale fold + fuse + pad + bf16 cast).
    wqkv = prepare_head_params(wq_t, wk_t, wv_t, n_embd)

    out = head_forward(x, wqkv, head_size)
    out = jax.block_until_ready(out)

    ref = head_reference(x, wq_t, wk_t, wv_t)
    assert out.shape == (B, T, head_size), out.shape
    # Tolerance accounts for bf16 MXU operands (f32 accumulation).
    max_err = float(jnp.max(jnp.abs(out - ref)))
    assert jnp.allclose(out, ref, atol=3e-2, rtol=3e-2), max_err

    print("KERNEL_OK")
</pallas_src>

<mosaic_0001>
module attributes {stable_mosaic.version = 11 : i64} {
  func.func @_head_kernel(%arg0: i32, %arg1: memref<1x8x32xf32, #tpu.memory_space<vmem>>, %arg2: memref<32x384xbf16, #tpu.memory_space<vmem>>, %arg3: memref<1x8x128xf32, #tpu.memory_space<vmem>>) attributes {dimension_semantics = [#tpu.dimension_semantics<parallel>], iteration_bounds = array<i64: 2>, scalar_prefetch = 0 : i64, scratch_operands = 0 : i64, tpu.core_type = #tpu.core_type<tc>, window_params = [{transform_indices = @transform_0, window_bounds = array<i64: 1, 8, 32>}, {pipeline_mode = #tpu.pipeline_mode<synchronous>, transform_indices = @transform_1, window_bounds = array<i64: 32, 384>}, {transform_indices = @transform_2, window_bounds = array<i64: 1, 8, 128>}]} {
    %c0 = arith.constant 0 : index
    %c0_0 = arith.constant 0 : index
    %c0_1 = arith.constant 0 : index
    %0 = vector.load %arg1[%c0, %c0_0, %c0_1] : memref<1x8x32xf32, #tpu.memory_space<vmem>>, vector<1x8x32xf32>
    %1 = vector.shape_cast %0 : vector<1x8x32xf32> to vector<8x32xf32>
    %2 = arith.truncf %1 : vector<8x32xf32> to vector<8x32xbf16>
    %c0_2 = arith.constant 0 : index
    %c0_3 = arith.constant 0 : index
    %3 = vector.load %arg2[%c0_2, %c0_3] : memref<32x384xbf16, #tpu.memory_space<vmem>>, vector<32x384xbf16>
    %cst = arith.constant dense<0.000000e+00> : vector<8x384xf32>
    %4 = tpu.matmul %2, %3, %cst {dimension_numbers = #tpu.dot_dimension_numbers<[1], [0], [0], [1], [0, 0, 1, 1], [], []>} : vector<8x32xbf16>, vector<32x384xbf16>, vector<8x384xf32> -> vector<8x384xf32>
    %5 = vector.shape_cast %4 : vector<8x384xf32> to vector<1x8x384xf32>
    %6 = vector.extract_strided_slice %5 {offsets = [0, 0, 0], sizes = [1, 8, 128], strides = [1, 1, 1]} : vector<1x8x384xf32> to vector<1x8x128xf32>
    %7 = vector.extract_strided_slice %5 {offsets = [0, 0, 128], sizes = [1, 8, 128], strides = [1, 1, 1]} : vector<1x8x384xf32> to vector<1x8x128xf32>
    %8 = vector.extract_strided_slice %5 {offsets = [0, 0, 256], sizes = [1, 8, 128], strides = [1, 1, 1]} : vector<1x8x384xf32> to vector<1x8x128xf32>
    %9 = arith.truncf %6 : vector<1x8x128xf32> to vector<1x8x128xbf16>
    %10 = arith.truncf %7 : vector<1x8x128xf32> to vector<1x8x128xbf16>
    %cst_4 = arith.constant dense<0.000000e+00> : vector<1x8x8xf32>
    %11 = tpu.matmul %9, %10, %cst_4 {dimension_numbers = #tpu.dot_dimension_numbers<[2], [2], [1], [1], [0, 0, 0, 1, 1, 1], [0], [0]>} : vector<1x8x128xbf16>, vector<1x8x128xbf16>, vector<1x8x8xf32> -> vector<1x8x8xf32>
    %12 = tpu.iota {dimensions = array<i32: 0>} : vector<8x8xi32>
    %13 = tpu.iota {dimensions = array<i32: 1>} : vector<8x8xi32>
    %14 = arith.cmpi sle, %13, %12 : vector<8x8xi32>
    %15 = vector.shape_cast %14 : vector<8x8xi1> to vector<1x8x8xi1>
    %cst_5 = arith.constant -1.000000e+30 : f32
    %16 = vector.broadcast %cst_5 : f32 to vector<1x8x8xf32>
    %17 = arith.select %15, %11, %16 : vector<1x8x8xi1>, vector<1x8x8xf32>
    %cst_6 = arith.constant dense<0xFF800000> : vector<1x8xf32>
    %18 = vector.multi_reduction <maximumf>, %17, %cst_6 [2] : vector<1x8x8xf32> to vector<1x8xf32>
    %19 = vector.shape_cast %18 : vector<1x8xf32> to vector<1x8x1xf32>
    %20 = vector.broadcast %19 : vector<1x8x1xf32> to vector<1x8x8xf32>
    %21 = arith.subf %17, %20 : vector<1x8x8xf32>
    %22 = math.exp %21 : vector<1x8x8xf32>
    %cst_7 = arith.constant dense<0.000000e+00> : vector<1x8xf32>
    %23 = vector.multi_reduction <add>, %22, %cst_7 [2] : vector<1x8x8xf32> to vector<1x8xf32>
    %24 = vector.shape_cast %23 : vector<1x8xf32> to vector<1x8x1xf32>
    %25 = vector.broadcast %24 : vector<1x8x1xf32> to vector<1x8x8xf32>
    %26 = arith.divf %22, %25 : vector<1x8x8xf32>
    %27 = arith.truncf %26 : vector<1x8x8xf32> to vector<1x8x8xbf16>
    %28 = arith.truncf %8 : vector<1x8x128xf32> to vector<1x8x128xbf16>
    %cst_8 = arith.constant dense<0.000000e+00> : vector<1x8x128xf32>
    %29 = tpu.matmul %27, %28, %cst_8 {dimension_numbers = #tpu.dot_dimension_numbers<[2], [1], [1], [2], [0, 0, 0, 1, 1, 2], [0], [0]>} : vector<1x8x8xbf16>, vector<1x8x128xbf16>, vector<1x8x128xf32> -> vector<1x8x128xf32>
    %c0_9 = arith.constant 0 : index
    %c0_10 = arith.constant 0 : index
    %c0_11 = arith.constant 0 : index
    %30 = vector.load %arg3[%c0_9, %c0_10, %c0_11] : memref<1x8x128xf32, #tpu.memory_space<vmem>>, vector<1x8x128xf32>
    tpu.vector_store %arg3[%c0_9, %c0_10, %c0_11], %29 {strides = array<i32>} : memref<1x8x128xf32, #tpu.memory_space<vmem>>, vector<1x8x128xf32>,
    return
  }
  func.func @transform_0(%arg0: i32) -> (i32, i32, i32) {
    %c0_i32 = arith.constant 0 : i32
    %c0_i32_0 = arith.constant 0 : i32
    %c0_i32_1 = arith.constant 0 : i32
    return %arg0, %c0_i32, %c0_i32_0 : i32, i32, i32
  }
  func.func @transform_1(%arg0: i32) -> (i32, i32) {
    %c0_i32 = arith.constant 0 : i32
    %c0_i32_0 = arith.constant 0 : i32
    %c0_i32_1 = arith.constant 0 : i32
    return %c0_i32, %c0_i32_0 : i32, i32
  }
  func.func @transform_2(%arg0: i32) -> (i32, i32, i32) {
    %c0_i32 = arith.constant 0 : i32
    %c0_i32_0 = arith.constant 0 : i32
    %c0_i32_1 = arith.constant 0 : i32
    return %arg0, %c0_i32, %c0_i32_0 : i32, i32, i32
  }
}

</mosaic_0001>

<llo_original>
// kernel: tpu_custom_call.1
$region0: #{tpu_custom_call.1}
  #allocation0 [shape = 'u32[]', space=smem, size = 0x4, offset = 0x4, fixed_abs, tag = 'smem constant byte address 0x4 - core index']
  #allocation1 [shape = 'u32[144,128]{1,0:T(1,128)}', space=vmem, size = 0x12000, scoped, tag = 'internal scratch']
  %s0 = inlined_call_operand.hbm [shape: f32[2,8,32], index: 0, kind: input, shape index: {}]
  %s1 = inlined_call_operand.hbm [shape: bf16[32,384], index: 1, kind: input, shape index: {}]
  %s2 = inlined_call_operand.hbm [shape: f32[2,8,128], index: 2, kind: output, shape index: {}]
  %s3 = sld [smem:[#allocation0]]
  $region49: #{tpu_custom_call.1} parent=0
    _
  %s5 = ssub.s32 1, %s3
  %s6 = scalar_select 0, %s5, %s3
  $region1: #{tpu_custom_call.1} parent=0
    #allocation2 [shape = 'u8[8192]{0}', space=vmem, size = 0x2000, scoped, tag = 'input window, operand 0']
    #allocation3 [shape = 's32[2]{0}', space=sflag, size = 0x8, scoped, tag = 'scoped memory for tpu_custom_call.1']
    #allocation4 [shape = 's32[2]{0}', space=sflag, size = 0x8, scoped, tag = 'scoped memory for tpu_custom_call.1']
    #allocation5 [shape = 'u8[24576]{0}', space=vmem, size = 0x6000, scoped, tag = 'input window, operand 1, single buffered']
    #allocation6 [shape = 's32[1]{0}', space=sflag, size = 0x4, scoped, tag = 'scoped memory for tpu_custom_call.1']
    #allocation7 [shape = 'u8[8192]{0}', space=vmem, size = 0x2000, scoped, tag = 'output window, operand 0']
    %7 = vsyncpa [#allocation3], 0
    %s8 = scalar_lea.sflag [#allocation3], 1
    %9 = vsyncpa %s8, 0
    %10 = vsyncpa [#allocation6], 0
    %11 = vsyncpa [#allocation4], 0
    %s12 = scalar_lea.sflag [#allocation4], 1
    %13 = vsyncpa %s12, 0
    loop: start=0, step=1, limit=4
    $region2: #{tpu_custom_call.1} parent=1 // loop_pre_header
      _
    $region3: #{tpu_custom_call.1} parent=1 // loop_header
      %s15 = sphi 0, %s19
      %p16 = scmp.ge.s32.totalorder %s15, 4
      %s25 = sphi 0, %s27
      %s28 = sphi 0, %s25
      %s29 = sphi 0, %s28
      %s45 = sphi 0, %s29
      %s49 = sphi 0, %s49
      %s51 = sphi 0, %s49
      %s52 = sphi 0, %s51
      %s66 = sphi 0, %s52
      %s72 = sphi 0, %s74
      %s75 = sphi 0, %s72
      %s76 = sphi 0, %s75
      %s92 = sphi 0, %s76
    $region4: #{tpu_custom_call.1} parent=1 // loop_header_branch
      %18 = sbr.rel (%p16) target = $region8
    $region5: #{tpu_custom_call.1} parent=1 // loop_body
      %s20 = ssub.s32 %s15, 1
      %s21 = ssub.s32 %s15, 2
      %s22 = sadd.s32 %s15, 1
      %s23 = ssub.s32 %s15, %s22
      %p24 = scmp.eq.s32.totalorder %s23, 0
      %s26 = sadd.s32 %s25, 1
      %s27 = scalar_select %p24, %s25, %s26
      %p30 = pneg %p24
      %p31 = scmp.eq.s32.totalorder %s15, 1
      %p32 = por %p30, %p31
      %p33 = scmp.ne.s32.totalorder %s25, %s28
      %p34 = scmp.eq.s32.totalorder %s15, 0
      %p35 = por %p33, %p34
      %p36 = scmp.ne.s32.totalorder %s25, %s28
      %p37 = scmp.eq.s32.totalorder %s20, 1
      %p38 = por %p36, %p37
      %p39 = scmp.ne.s32.totalorder %s28, %s29
      %p40 = scmp.eq.s32.totalorder %s20, 0
      %p41 = por %p39, %p40
      %p42 = scmp.ne.s32.totalorder %s28, %s29
      %p43 = scmp.eq.s32.totalorder %s21, 1
      %p44 = por %p42, %p43
      %p46 = scmp.ne.s32.totalorder %s29, %s45
      %p47 = scmp.eq.s32.totalorder %s21, 0
      %p48 = por %p46, %p47
      %s50 = sadd.s32 %s49, 1
      %p53 = scmp.eq.s32.totalorder %s15, 1
      %p54 = scmp.ne.s32.totalorder %s49, %s51
      %p55 = scmp.eq.s32.totalorder %s15, 0
      %p56 = por %p54, %p55
      %p57 = scmp.ne.s32.totalorder %s49, %s51
      %p58 = scmp.eq.s32.totalorder %s20, 1
      %p59 = por %p57, %p58
      %p60 = scmp.ne.s32.totalorder %s51, %s52
      %p61 = scmp.eq.s32.totalorder %s20, 0
      %p62 = por %p60, %p61
      %p63 = scmp.ne.s32.totalorder %s51, %s52
      %p64 = scmp.eq.s32.totalorder %s21, 1
      %p65 = por %p63, %p64
      %p67 = scmp.ne.s32.totalorder %s52, %s66
      %p68 = scmp.eq.s32.totalorder %s21, 0
      %p69 = por %p67, %p68
      %s70 = ssub.s32 %s15, %s22
      %p71 = scmp.eq.s32.totalorder %s70, 0
      %s73 = sadd.s32 %s72, 1
      %s74 = scalar_select %p71, %s72, %s73
      %p77 = pneg %p71
      %p78 = scmp.eq.s32.totalorder %s15, 1
      %p79 = por %p77, %p78
      %p80 = scmp.ne.s32.totalorder %s72, %s75
      %p81 = scmp.eq.s32.totalorder %s15, 0
      %p82 = por %p80, %p81
      %p83 = scmp.ne.s32.totalorder %s72, %s75
      %p84 = scmp.eq.s32.totalorder %s20, 1
      %p85 = por %p83, %p84
      %p86 = scmp.ne.s32.totalorder %s75, %s76
      %p87 = scmp.eq.s32.totalorder %s20, 0
      %p88 = por %p86, %p87
      %p89 = scmp.ne.s32.totalorder %s75, %s76
      %p90 = scmp.eq.s32.totalorder %s21, 1
      %p91 = por %p89, %p90
      %p93 = scmp.ne.s32.totalorder %s76, %s92
      %p94 = scmp.eq.s32.totalorder %s21, 0
      %p95 = por %p93, %p94
      %p96 = scmp.le.s32.totalorder 1, %s15
      %p97 = scmp.lt.s32.totalorder %s15, 3
      %p98 = pnand %p96, %p97
      %p99 = pneg %p98
      // Predicated region
      $region9: #{tpu_custom_call.1} parent=5 // pred_check
        _
      $region10: #{tpu_custom_call.1} parent=5 // pred_check_branch
        %101 = sbr.rel (%p98) target = $region12
      $region11: #{tpu_custom_call.1} parent=5 // pred_region
        %s102 = ssub.s32 %s15, 1
        // Predicated region
        $region13: #{tpu_custom_call.1} parent=11 // pred_check
          %p103 = pneg %p62
        $region14: #{tpu_custom_call.1} parent=11 // pred_check_branch
          %105 = sbr.rel (%p103) target = $region16
        $region15: #{tpu_custom_call.1} parent=11 // pred_region
          %s107 = ssub.s32 768, 768
          %108 = vsyncadd [#allocation6], %s107
          %s109 = sshll.u32 [#allocation5], 4
          %s110 = int_to_ptr.vmem [resolvable:$true] %s109
          %115 = dma.hbm_to_vmem [thread:$0]  %s1, 768, %s110, [#allocation6], 192, 192, 12
        $region16: #{tpu_custom_call.1} parent=11 // pred_fallthru
          _
      $region12: #{tpu_custom_call.1} parent=5 // pred_fallthru
        _
      %p116 = scmp.lt.s32.totalorder %s15, 2
      // Predicated region
      $region17: #{tpu_custom_call.1} parent=5 // pred_check
        %p117 = pneg %p116
      $region18: #{tpu_custom_call.1} parent=5 // pred_check_branch
        %119 = sbr.rel (%p117) target = $region20
      $region19: #{tpu_custom_call.1} parent=5 // pred_region
        // Predicated region
        $region21: #{tpu_custom_call.1} parent=19 // pred_check
          %p120 = pneg %p35
        $region22: #{tpu_custom_call.1} parent=19 // pred_check_branch
          %122 = sbr.rel (%p120) target = $region24
        $region23: #{tpu_custom_call.1} parent=19 // pred_region
          %s123 = sand.u32 %s25, 1
          %s124 = scalar_lea.sflag [#allocation3], %s123
          %s125 = sand.u32 %s25, 1
          %s126 = smul.addr %s125, 8
          %s127 = scalar_lea.vmem [#allocation2], %s126
          %s129 = ssub.s32 128, 128
          %130 = vsyncadd %s124, %s129
          %s131 = smul.addr %s15, 128
          %s132 = scalar_lea.hbm %s0, %s131
          %s134 = sshll.u32 %s127, 4
          %s135 = int_to_ptr.vmem [resolvable:$true] %s134
          %137 = dma.hbm_to_vmem [thread:$0]  %s132, 128, %s135, %s124
        $region24: #{tpu_custom_call.1} parent=19 // pred_fallthru
          _
      $region20: #{tpu_custom_call.1} parent=5 // pred_fallthru
        _
      %p138 = scmp.le.s32.totalorder 1, %s15
      %p139 = scmp.lt.s32.totalorder %s15, 3
      %p140 = pnand %p138, %p139
      %p141 = pneg %p140
      // Predicated region
      $region25: #{tpu_custom_call.1} parent=5 // pred_check
        _
      $region26: #{tpu_custom_call.1} parent=5 // pred_check_branch
        %143 = sbr.rel (%p140) target = $region28
      $region27: #{tpu_custom_call.1} parent=5 // pred_region
        %s144 = ssub.s32 %s15, 1
        %s145 = sand.u32 %s28, 1
        %s146 = scalar_lea.sflag [#allocation3], %s145
        %s147 = sand.u32 %s28, 1
        %s148 = smul.addr %s147, 8
        %s149 = scalar_lea.vmem [#allocation2], %s148
        // Predicated region
        $region29: #{tpu_custom_call.1} parent=27 // pred_check
          %p150 = pneg %p41
        $region30: #{tpu_custom_call.1} parent=27 // pred_check_branch
          %152 = sbr.rel (%p150) target = $region32
        $region31: #{tpu_custom_call.1} parent=27 // pred_region
          %153 = dma.done %s146, 128
        $region32: #{tpu_custom_call.1} parent=27 // pred_fallthru
          _
        // Predicated region
        $region33: #{tpu_custom_call.1} parent=27 // pred_check
          %p154 = pneg %p62
        $region34: #{tpu_custom_call.1} parent=27 // pred_check_branch
          %156 = sbr.rel (%p154) target = $region36
        $region35: #{tpu_custom_call.1} parent=27 // pred_region
          %157 = dma.done [#allocation6], 768
        $region36: #{tpu_custom_call.1} parent=27 // pred_fallthru
          _
        %s158 = sand.u32 %s28, 1
        %s159 = scalar_lea.sflag [#allocation3], %s158
        %s160 = sand.u32 %s28, 1
        %s161 = smul.addr %s160, 8
        %s162 = scalar_lea.vmem [#allocation2], %s161
        %p163 = pneg %p41
        %p164 = pneg %p38
        %p165 = pneg %p62
        %p166 = pneg %p59
        %p167 = pneg %p88
        %p168 = pneg %p85
        %s169 = sand.u32 %s75, 1
        %s170 = scalar_lea.sflag [#allocation4], %s169
        %s171 = sand.u32 %s75, 1
        %s172 = smul.addr %s171, 8
        %s173 = scalar_lea.vmem [#allocation7], %s172
        %v175 = vld [vmem:[%s149] sm:$0xff]
        %v176 = vpack.c.bf16 %v175, %v175
        %v177 = vld [vmem:[#allocation5] sm:$0xff]
        %v178 = vld [vmem:[#allocation5 + $0x8] sm:$0xf]
        %v179 = vld [vmem:[#allocation5 + $0xc] sm:$0xff]
        %v180 = vld [vmem:[#allocation5 + $0x14] sm:$0xf]
        %v181 = vld [vmem:[#allocation5 + $0x18] sm:$0xff]
        %v182 = vld [vmem:[#allocation5 + $0x20] sm:$0xf]
        %v183 = vld [vmem:[#allocation5 + $0x24] sm:$0xff]
        %v184 = vld [vmem:[#allocation5 + $0x2c] sm:$0xf]
        %v193 = vunpack.c.l.b16 %v177
        %v194 = vunpack.c.h.b16 %v177
        %v195 = vunpack.c.l.b16 %v178
        %v196 = vunpack.c.l.b16 %v179
        %v197 = vunpack.c.h.b16 %v179
        %v198 = vunpack.c.l.b16 %v180
        %v199 = vunpack.c.l.b16 %v181
        %v200 = vunpack.c.h.b16 %v181
        %v201 = vunpack.c.l.b16 %v182
        %v202 = vunpack.c.l.b16 %v183
        %v203 = vunpack.c.h.b16 %v183
        %v204 = vunpack.c.l.b16 %v184
        %v205 = vpack.c.b16 %v196, %v193
        %v206 = vpack.c.b16 %v197, %v194
        %v207 = vpack.c.b16 %v198, %v195
        %v208 = vpack.c.b16 %v202, %v199
        %v209 = vpack.c.b16 %v203, %v200
        %v210 = vpack.c.b16 %v204, %v201
        %vm217 = vcmask 261120
        %v219 = vsel %vm217, %v176, 0
        %221 = vmatprep.subr.bf16.mxu0 %v206
        %222 = vmatpush1.bf16.msra.mxu0 %v205
        %223 = vmatprep.subr.bf16.mxu0 %v209
        %224 = vmatpush1.bf16.msra.mxu0 %v208
        %225 = vmatprep.subr.bf16.mxu0 0
        %226 = vmatpush1.bf16.msra.mxu0 0
        %227 = vmatprep.subr.bf16.mxu0 0
        %228 = vmatpush1.bf16.msra.mxu0 0
        %229 = vmatprep.subr.bf16.mxu0 0
        %230 = vmatpush1.bf16.msra.mxu0 0
        %231 = vmatprep.subr.bf16.mxu0 0
        %232 = vmatpush1.bf16.msra.mxu0 0
        %233 = vmatprep.subr.bf16.mxu0 0
        %234 = vmatpush1.bf16.msra.mxu0 0
        %235 = vmatprep.subr.bf16.mxu0 0
        %236 = vmatpush1.bf16.msra.mxu0 0
        %237 = vmatprep.subr.bf16.mxu0 0
        %238 = vmatpush1.bf16.msra.mxu0 0
        %239 = vmatprep.subr.bf16.mxu0 0
        %240 = vmatpush1.bf16.msra.mxu0 0
        %241 = vmatprep.subr.bf16.mxu0 0
        %242 = vmatpush1.bf16.msra.mxu0 0
        %243 = vmatprep.subr.bf16.mxu0 0
        %244 = vmatpush1.bf16.msra.mxu0 0
        %245 = vmatprep.subr.bf16.mxu0 0
        %246 = vmatpush1.bf16.msra.mxu0 0
        %247 = vmatprep.subr.bf16.mxu0 0
        %248 = vmatpush1.bf16.msra.mxu0 0
        %249 = vmatprep.subr.bf16.mxu0 0
        %250 = vmatpush1.bf16.msra.mxu0 0
        %251 = vmatprep.subr.bf16.mxu0 0
        %252 = vmatpush1.bf16.msra.mxu0 0
        %253 = vmatprep.mubr.bf16.mxu0 0
        %254 = vmatmul.mubr.bf16.gmra.mrb[0].mxu0 %v219
        %v255 = vpop.f32.mrb[0].mxu0
        %v256 = vadd.f32 0.0, %v255
        %v257 = vpop.f32.mrb[0].mxu0
        %v258 = vadd.f32 0.0, %v257
        %v259 = vpop.f32.mrb[0].mxu0
        %v260 = vpop.f32.mrb[0].mxu0
        %261 = vdwg.mxu0
        %262 = vmatprep.subr.bf16.mxu0 0
        %263 = vmatpush1.bf16.msra.mxu0 %v207
        %264 = vmatprep.subr.bf16.mxu0 0
        %265 = vmatpush1.bf16.msra.mxu0 %v210
        %266 = vmatprep.subr.bf16.mxu0 0
        %267 = vmatpush1.bf16.msra.mxu0 0
        %268 = vmatprep.subr.bf16.mxu0 0
        %269 = vmatpush1.bf16.msra.mxu0 0
        %270 = vmatprep.subr.bf16.mxu0 0
        %271 = vmatpush1.bf16.msra.mxu0 0
        %272 = vmatprep.subr.bf16.mxu0 0
        %273 = vmatpush1.bf16.msra.mxu0 0
        %274 = vmatprep.subr.bf16.mxu0 0
        %275 = vmatpush1.bf16.msra.mxu0 0
        %276 = vmatprep.subr.bf16.mxu0 0
        %277 = vmatpush1.bf16.msra.mxu0 0
        %278 = vmatprep.subr.bf16.mxu0 0
        %279 = vmatpush1.bf16.msra.mxu0 0
        %280 = vmatprep.subr.bf16.mxu0 0
        %281 = vmatpush1.bf16.msra.mxu0 0
        %282 = vmatprep.subr.bf16.mxu0 0
        %283 = vmatpush1.bf16.msra.mxu0 0
        %284 = vmatprep.subr.bf16.mxu0 0
        %285 = vmatpush1.bf16.msra.mxu0 0
        %286 = vmatprep.subr.bf16.mxu0 0
        %287 = vmatpush1.bf16.msra.mxu0 0
        %288 = vmatprep.subr.bf16.mxu0 0
        %289 = vmatpush1.bf16.msra.mxu0 0
        %290 = vmatprep.subr.bf16.mxu0 0
        %291 = vmatpush1.bf16.msra.mxu0 0
        %292 = vmatprep.subr.bf16.mxu0 0
        %293 = vmatpush1.bf16.msra.mxu0 0
        %294 = vmatprep.mubr.bf16.mxu0 0
        %295 = vmatmul.mubr.bf16.gmra.mrb[0].mxu0 %v219
        %v296 = vpop.f32.mrb[0].mxu0
        %v297 = vadd.f32 0.0, %v296
        %v298 = vpop.f32.mrb[0].mxu0
        %v299 = vpop.f32.mrb[0].mxu0
        %v300 = vpop.f32.mrb[0].mxu0
        %301 = vdwg.mxu0
        %v302 = vpack.c.bf16 %v256, %v256
        %v303 = vpack.c.bf16 %v258, %v258
        %304 = vmatprep.subr.bf16.mxu0 0
        %305 = vmatpush1.bf16.xpose.msra.mxu0 %v303
        %306 = vmatprep.subr.bf16.mxu0 0
        %307 = vmatpush1.bf16.xpose.msra.mxu0 0
        %308 = vmatprep.subr.bf16.mxu0 0
        %309 = vmatpush1.bf16.xpose.msra.mxu0 0
        %310 = vmatprep.subr.bf16.mxu0 0
        %311 = vmatpush1.bf16.xpose.msra.mxu0 0
        %312 = vmatprep.subr.bf16.mxu0 0
        %313 = vmatpush1.bf16.xpose.msra.mxu0 0
        %314 = vmatprep.subr.bf16.mxu0 0
        %315 = vmatpush1.bf16.xpose.msra.mxu0 0
        %316 = vmatprep.subr.bf16.mxu0 0
        %317 = vmatpush1.bf16.xpose.msra.mxu0 0
        %318 = vmatprep.subr.bf16.mxu0 0
        %319 = vmatpush1.bf16.xpose.msra.mxu0 0
        %320 = vmatprep.subr.bf16.mxu0 0
        %321 = vmatpush1.bf16.xpose.msra.mxu0 0
        %322 = vmatprep.subr.bf16.mxu0 0
        %323 = vmatpush1.bf16.xpose.msra.mxu0 0
        %324 = vmatprep.subr.bf16.mxu0 0
        %325 = vmatpush1.bf16.xpose.msra.mxu0 0
        %326 = vmatprep.subr.bf16.mxu0 0
        %327 = vmatpush1.bf16.xpose.msra.mxu0 0
        %328 = vmatprep.subr.bf16.mxu0 0
        %329 = vmatpush1.bf16.xpose.msra.mxu0 0
        %330 = vmatprep.subr.bf16.mxu0 0
        %331 = vmatpush1.bf16.xpose.msra.mxu0 0
        %332 = vmatprep.subr.bf16.mxu0 0
        %333 = vmatpush1.bf16.xpose.msra.mxu0 0
        %334 = vmatprep.subr.bf16.mxu0 0
        %335 = vmatpush1.bf16.xpose.msra.mxu0 0
        %336 = vmatprep.mubr.bf16.mxu0 0
        %337 = vmatmul.mubr.bf16.gmra.mrb[0].mxu0 %v302
        %v338 = vpop.f32.mrb[0].mxu0
        %v339 = vadd.f32 0.0, %v338
        %v340 = vpop.f32.mrb[0].mxu0
        %v341 = vpop.f32.mrb[0].mxu0
        %v342 = vpop.f32.mrb[0].mxu0
        %343 = vdwg.mxu0
        %v344 = vlaneseq
        %v345 = vshrl.u32 %v344, 7
        %v346 = vlaneseq
        %v347 = vand.u32 %v346, 127
        %vm348 = vcmp.le.s32.totalorder %v347, %v345
        %v349 = vsel %vm348, %v339, -1e+30
        %vm350 = vcmask 64512
        %v351 = vsel %vm350, %v349, -inf
        %352 = vmax.xlane.f32.xlu0 %v351
        %v353 = vpop.xlane.xlu0 %352
        %v354 = vsub.f32 %v349, %v353
        %v355 = vmul.f32 %v354, 1.442695
        %v356 = vpow.pop %v355
        %v357 = vsel %vm350, %v356, 0.0
        %358 = vadd.xlane.f32.xlu0 %v357
        %v359 = vpop.xlane.xlu0 %358
        %v360 = vrcp.pop %v359
        %v361 = vmul.f32 %v356, %v360
        %v362 = vpack.c.bf16 %v361, %v361
        %v363 = vpack.c.bf16 %v297, %v297
        %v365 = vsel %vm350, %v362, 0
        %vm367 = vcmask 1043456
        %v369 = vsel %vm367, %v363, 0
        %371 = vmatprep.subr.bf16.mxu0 0
        %372 = vmatpush1.bf16.msra.mxu0 %v369
        %373 = vmatprep.subr.bf16.mxu0 0
        %374 = vmatpush1.bf16.msra.mxu0 0
        %375 = vmatprep.subr.bf16.mxu0 0
        %376 = vmatpush1.bf16.msra.mxu0 0
        %377 = vmatprep.subr.bf16.mxu0 0
        %378 = vmatpush1.bf16.msra.mxu0 0
        %379 = vmatprep.subr.bf16.mxu0 0
        %380 = vmatpush1.bf16.msra.mxu0 0
        %381 = vmatprep.subr.bf16.mxu0 0
        %382 = vmatpush1.bf16.msra.mxu0 0
        %383 = vmatprep.subr.bf16.mxu0 0
        %384 = vmatpush1.bf16.msra.mxu0 0
        %385 = vmatprep.subr.bf16.mxu0 0
        %386 = vmatpush1.bf16.msra.mxu0 0
        %387 = vmatprep.subr.bf16.mxu0 0
        %388 = vmatpush1.bf16.msra.mxu0 0
        %389 = vmatprep.subr.bf16.mxu0 0
        %390 = vmatpush1.bf16.msra.mxu0 0
        %391 = vmatprep.subr.bf16.mxu0 0
        %392 = vmatpush1.bf16.msra.mxu0 0
        %393 = vmatprep.subr.bf16.mxu0 0
        %394 = vmatpush1.bf16.msra.mxu0 0
        %395 = vmatprep.subr.bf16.mxu0 0
        %396 = vmatpush1.bf16.msra.mxu0 0
        %397 = vmatprep.subr.bf16.mxu0 0
        %398 = vmatpush1.bf16.msra.mxu0 0
        %399 = vmatprep.subr.bf16.mxu0 0
        %400 = vmatpush1.bf16.msra.mxu0 0
        %401 = vmatprep.subr.bf16.mxu0 0
        %402 = vmatpush1.bf16.msra.mxu0 0
        %403 = vmatprep.mubr.bf16.mxu0 0
        %404 = vmatmul.mubr.bf16.gmra.mrb[0].mxu0 %v365
        %v405 = vpop.f32.mrb[0].mxu0
        %v406 = vadd.f32 0.0, %v405
        %v407 = vpop.f32.mrb[0].mxu0
        %v408 = vpop.f32.mrb[0].mxu0
        %v409 = vpop.f32.mrb[0].mxu0
        %410 = vdwg.mxu0
        %411 = vst [vmem:[%s173] sm:$0xff] %v406
        %s412 = sand.u32 %s75, 1
        %s413 = scalar_lea.sflag [#allocation4], %s412
        %s414 = sand.u32 %s75, 1
        %s415 = smul.addr %s414, 8
        %s416 = scalar_lea.vmem [#allocation7], %s415
        // Predicated region
        $region37: #{tpu_custom_call.1} parent=27 // pred_check
          %p417 = pneg %p85
        $region38: #{tpu_custom_call.1} parent=27 // pred_check_branch
          %419 = sbr.rel (%p417) target = $region40
        $region39: #{tpu_custom_call.1} parent=27 // pred_region
          %s421 = ssub.s32 128, 128
          %422 = vsyncadd %s413, %s421
          %s423 = smul.addr %s20, 128
          %s424 = scalar_lea.hbm %s2, %s423
          %s426 = sshll.u32 %s416, 4
          %s427 = int_to_ptr.vmem [resolvable:$true] %s426
          %429 = dma.vmem_to_hbm [thread:$0]  %s427, 128, %s424, %s413
        $region40: #{tpu_custom_call.1} parent=27 // pred_fallthru
          _
      $region28: #{tpu_custom_call.1} parent=5 // pred_fallthru
        _
      %p430 = scmp.le.s32.totalorder 2, %s15
      // Predicated region
      $region41: #{tpu_custom_call.1} parent=5 // pred_check
        %p431 = pneg %p430
      $region42: #{tpu_custom_call.1} parent=5 // pred_check_branch
        %433 = sbr.rel (%p431) target = $region44
      $region43: #{tpu_custom_call.1} parent=5 // pred_region
        %s434 = ssub.s32 %s15, 2
        // Predicated region
        $region45: #{tpu_custom_call.1} parent=43 // pred_check
          %p435 = pneg %p91
        $region46: #{tpu_custom_call.1} parent=43 // pred_check_branch
          %437 = sbr.rel (%p435) target = $region48
        $region47: #{tpu_custom_call.1} parent=43 // pred_region
          %s438 = sand.u32 %s76, 1
          %s439 = scalar_lea.sflag [#allocation4], %s438
          %s440 = sand.u32 %s76, 1
          %s441 = smul.addr %s440, 8
          %s442 = scalar_lea.vmem [#allocation7], %s441
          %443 = dma.done %s439, 128
        $region48: #{tpu_custom_call.1} parent=43 // pred_fallthru
          _
      $region44: #{tpu_custom_call.1} parent=5 // pred_fallthru
        _
    $region6: #{tpu_custom_call.1} parent=1 // loop_footer
      %s19 = sadd.s32 1, %s15
    $region7: #{tpu_custom_call.1} parent=1 // loop_footer_branch
      %14 = sbr.rel target = $region3
    $region8: #{tpu_custom_call.1} parent=1 // loop_exit
      _
    %444 = vsyncpa [#allocation3], 1
    %s445 = scalar_lea.sflag [#allocation3], 1
    %446 = vsyncpa %s445, 1
    %447 = vsyncpa [#allocation6], 1
    %448 = vsyncpa [#allocation4], 1
    %s449 = scalar_lea.sflag [#allocation4], 1
    %450 = vsyncpa %s449, 1

</llo_original>
